<compile_context>
chip_gen: v6e
topology: v6e:2x2x1
jax: 0.10.0
libtpu: 0.0.40
codegen_flags: <defaults>
</compile_context>

<pallas_src>
import jax
import jax.numpy as jnp
from jax import lax
from jax.experimental import pallas as pl
from jax.experimental.pallas import tpu as pltpu

_NEG_BIG = -1e30  # finite "-inf": avoids 0 * (-inf) = NaN for empty/padded graphs


def _gap_kernel(wx_ref, at_ref, bid_ref, x_ref, out_ref,
                mrun_ref, lrun_ref, acc_ref):
    """Grid axis 0: dst-node tiles (sequential, carries online-softmax state).

    wx_ref : [8, N_pad]       f32, resident. row0 = w_rel . x_j,
                              row1 = w_root . x_j + bias (folded).
    at_ref : [N_pad, TILE_N]  bf16 A^T dst tile (at[src, dst] = edge count).
    bid_ref: [1, TILE_N]      int32 graph id per dst node (-1 for padding).
    x_ref  : [TILE_N, H_pad]  f32 node features for this dst tile.
    out_ref: [B_pad, H_pad]   f32 pooled output.
    """
    i = pl.program_id(0)
    tile_n = at_ref.shape[1]
    b_pad = acc_ref.shape[0]

    @pl.when(i == 0)
    def _init():
        mrun_ref[...] = jnp.full_like(mrun_ref, _NEG_BIG)
        lrun_ref[...] = jnp.zeros_like(lrun_ref)
        acc_ref[...] = jnp.zeros_like(acc_ref)

    start = pl.multiple_of(i * tile_n, tile_n)

    # --- GraphConv for this dst tile (reassociated: O(N*T) MXU work) --------
    # conv[d] = sum_{s->d} wx_rel[s] + wx_root[d]  (bias folded into wx_root).
    at_f32 = at_ref[...].astype(jnp.float32)          # lossless: small counts
    conv_rel = jnp.dot(wx_ref[...], at_f32,
                       preferred_element_type=jnp.float32)[0:1, :]     # [1, T]
    wx_tile = wx_ref[:, pl.ds(start, tile_n)]                          # [8, T]
    conv = conv_rel + wx_tile[1:2, :]                                  # [1, T]

    # --- per-graph membership rebuilt in-kernel from the int32 id stream ----
    gids = lax.broadcasted_iota(jnp.int32, (b_pad, tile_n), 0)         # [B, T]
    m_tile = (bid_ref[...] == gids).astype(jnp.float32)                # [B, T]

    # --- online segment softmax (flash-style) across dst tiles, per graph ---
    masked = jnp.where(m_tile > 0.0, conv, _NEG_BIG)                   # [B, T]
    tile_max = jnp.max(masked, axis=1, keepdims=True)                  # [B, 1]
    m_new = jnp.maximum(mrun_ref[...], tile_max)                       # [B, 1]
    alpha = jnp.exp(mrun_ref[...] - m_new)                             # [B, 1]
    p = m_tile * jnp.exp(masked - m_new)                               # [B, T]
    lrun_ref[...] = alpha * lrun_ref[...] + jnp.sum(p, axis=1, keepdims=True)

    # --- global_add_pool contribution of this tile: p @ x_tile --------------
    acc_ref[...] = alpha * acc_ref[...] + jnp.dot(
        p, x_ref[...], preferred_element_type=jnp.float32)             # [B, H]
    mrun_ref[...] = m_new

    @pl.when(i == pl.num_programs(0) - 1)
    def _finalize():
        l = lrun_ref[...]
        l_safe = jnp.where(l > 0.0, l, 1.0)
        inv = pl.reciprocal(l_safe, approx=True)        # EUP rcp (free slot)
        inv = inv * (2.0 - l_safe * inv)                # one Newton step (VPU)
        inv = jnp.where(l > 0.0, inv, 0.0)              # empty graphs -> zeros
        out_ref[...] = acc_ref[...] * inv


def _round_up(v, m):
    return ((v + m - 1) // m) * m


def global_attention_pool(x, edge_index, batch, w_rel, w_root, bias,
                          num_graphs, *, tile_n=256, at_dtype=jnp.bfloat16,
                          vmem_limit_bytes=48 * 1024 * 1024):
    """x: [N, H] f32, edge_index: [2, E] i32 (row0=src, row1=dst),
    batch: [N] i32 graph ids -> [num_graphs, H].

    VMEM sizing (dominant terms): 2 * N_pad*tile_n*itemsize(at_dtype) A^T
    double-buffer + 2 * tile_n*H_pad*4 x tiles + 2 * 8*N_pad*4 wx.  Defaults
    (tile_n=256, bf16 A^T, 48 MiB) are safe for v7x's 64 MiB VMEM; on
    v5e/v6e (128 MiB) raise vmem_limit_bytes to ~100 MiB and sweep
    tile_n=512 for better HBM-roofline utilisation; on v5e/v6e int8 A^T
    (counts <= 127) cuts the dominant stream another 2x."""
    n, h = x.shape
    n_pad = _round_up(max(n, tile_n), tile_n)
    h_pad = _round_up(h, 128)
    b_pad = _round_up(max(num_graphs, 8), 8)

    x = x.astype(jnp.float32)
    w_rel = w_rel.astype(jnp.float32)
    w_root = w_root.astype(jnp.float32)
    bias = bias.astype(jnp.float32)

    # --- hoisted GraphConv weight application (tiny [N,H]x[H,1] GEMVs) ------
    # wx[0, j] = w_rel . x_j ; wx[1, j] = w_root . x_j + bias (folded).
    wx_rel = jnp.matmul(x, w_rel.T, precision=lax.Precision.HIGHEST)[:, 0]
    wx_root = (jnp.matmul(x, w_root.T, precision=lax.Precision.HIGHEST)[:, 0]
               + bias[0, 0])
    wx = jnp.zeros((8, n_pad), jnp.float32)
    wx = wx.at[0, :n].set(wx_rel)
    wx = wx.at[1, :n].set(wx_root)

    x_p = jnp.zeros((n_pad, h_pad), jnp.float32).at[:n, :h].set(x)

    # Dense A^T in a narrow dtype (lossless: edge multiplicities are small
    # integers, exact in bf16 up to 256).
    # TODO(synk): O(E) edge-list segment-sum path to avoid the dense N^2 build.
    src, dst = edge_index[0], edge_index[1]
    at = (jnp.zeros((n_pad, n_pad), jnp.float32)
          .at[src, dst].add(1.0).astype(at_dtype))

    # Compact per-node graph ids (-1 marks padding); mask built in-kernel.
    batch_ids = jnp.full((1, n_pad), -1, jnp.int32)
    batch_ids = batch_ids.at[0, :n].set(batch.astype(jnp.int32))

    grid = (n_pad // tile_n,)
    at_bytes = jnp.dtype(at_dtype).itemsize

    cost = pl.CostEstimate(
        flops=int(2 * 8 * n_pad * n_pad            # wx @ A^T tiles (dominant)
                  + 2 * b_pad * n_pad * h_pad),    # p @ x pooling
        transcendentals=int(b_pad * n_pad + 2 * b_pad * grid[0]),
        bytes_accessed=int(at_bytes * n_pad * n_pad
                           + 4 * (n_pad * h_pad + 8 * n_pad + n_pad
                                  + b_pad * h_pad)),
    )

    # Note: wx and the output have constant block indices; pipeline_mode=
    # pl.Buffered(1) would single-buffer them, but after the wx hoist they are
    # only ~8*N_pad*4 B + B_pad*H_pad*4 B, so the default is kept for safety.
    out_p = pl.pallas_call(
        _gap_kernel,
        out_shape=jax.ShapeDtypeStruct((b_pad, h_pad), jnp.float32),
        grid=grid,
        in_specs=[
            pl.BlockSpec((8, n_pad), lambda i: (0, 0)),        # wx (resident)
            pl.BlockSpec((n_pad, tile_n), lambda i: (0, i)),   # A^T dst tile
            pl.BlockSpec((1, tile_n), lambda i: (0, i)),       # batch ids tile
            pl.BlockSpec((tile_n, h_pad), lambda i: (i, 0)),   # x dst tile
        ],
        out_specs=pl.BlockSpec((b_pad, h_pad), lambda i: (0, 0)),
        scratch_shapes=[
            pltpu.VMEM((b_pad, 1), jnp.float32),      # running max per graph
            pltpu.VMEM((b_pad, 1), jnp.float32),      # running denom per graph
            pltpu.VMEM((b_pad, h_pad), jnp.float32),  # output accumulator
        ],
        compiler_params=pltpu.CompilerParams(
            dimension_semantics=("arbitrary",),   # online softmax carries state
            vmem_limit_bytes=vmem_limit_bytes,
        ),
        cost_estimate=cost,
    )(wx, at, batch_ids, x_p)

    return out_p[:num_graphs, :h]


def _reference(x, edge_index, batch, w_rel, w_root, bias, num_graphs):
    """Pure-JAX reference mirroring PyG GraphConv + softmax + global_add_pool."""
    src, dst = edge_index[0], edge_index[1]
    agg = jnp.zeros_like(x).at[dst].add(x[src])
    conv = (jnp.matmul(agg, w_rel.T, precision=lax.Precision.HIGHEST)
            + jnp.matmul(x, w_root.T, precision=lax.Precision.HIGHEST)
            + bias[0, 0])                                              # [N, 1]
    c = conv[:, 0]
    seg_max = jax.ops.segment_max(c, batch, num_segments=num_graphs)
    e = jnp.exp(c - seg_max[batch])
    seg_sum = jax.ops.segment_sum(e, batch, num_segments=num_graphs)
    scores = e / seg_sum[batch]
    return jax.ops.segment_sum(x * scores[:, None], batch,
                               num_segments=num_graphs)


if __name__ == "__main__":
    H = 32
    sizes = (67, 67, 66)        # 3 graphs, 200 nodes
    N = sum(sizes)
    B = len(sizes)

    key = jax.random.PRNGKey(0)
    k_x, k_rel, k_root, k_b, k_e = jax.random.split(key, 5)

    x = jax.random.normal(k_x, (N, H), dtype=jnp.float32)
    # GraphConv(hidden_dim, 1) parameters (deterministic synthetic init).
    w_rel = jax.random.normal(k_rel, (1, H), dtype=jnp.float32) * 0.1
    w_root = jax.random.normal(k_root, (1, H), dtype=jnp.float32) * 0.1
    bias = jax.random.normal(k_b, (1, 1), dtype=jnp.float32) * 0.1

    batch = jnp.concatenate(
        [jnp.full((s,), g, dtype=jnp.int32) for g, s in enumerate(sizes)])

    # Random intra-graph edges (~4 per node).
    srcs, dsts, off = [], [], 0
    for s in sizes:
        k_e, k1, k2 = jax.random.split(k_e, 3)
        e = 4 * s
        srcs.append(jax.random.randint(k1, (e,), 0, s, dtype=jnp.int32) + off)
        dsts.append(jax.random.randint(k2, (e,), 0, s, dtype=jnp.int32) + off)
        off += s
    edge_index = jnp.stack([jnp.concatenate(srcs), jnp.concatenate(dsts)])

    ref = _reference(x, edge_index, batch, w_rel, w_root, bias, B)

    # tile_n=128 -> two dst tiles (exercises the online-softmax carry);
    # tile_n=256 (default) -> single tile (init + finalize on the same step).
    for tn in (128, 256):
        out = global_attention_pool(x, edge_index, batch, w_rel, w_root, bias,
                                    B, tile_n=tn)
        out = jax.block_until_ready(out)
        assert out.shape == (B, H)
        assert jnp.allclose(out, ref, rtol=1e-4, atol=1e-4), (tn, out, ref)

    print("KERNEL_OK")
</pallas_src>

<mosaic_0001>
module attributes {stable_mosaic.version = 11 : i64} {
  func.func @_gap_kernel(%arg0: i32, %arg1: memref<8x256xf32, #tpu.memory_space<vmem>>, %arg2: memref<256x128xbf16, #tpu.memory_space<vmem>>, %arg3: memref<1x128xi32, #tpu.memory_space<vmem>>, %arg4: memref<128x128xf32, #tpu.memory_space<vmem>>, %arg5: memref<8x128xf32, #tpu.memory_space<vmem>>, %arg6: memref<8x1xf32, #tpu.memory_space<vmem>>, %arg7: memref<8x1xf32, #tpu.memory_space<vmem>>, %arg8: memref<8x128xf32, #tpu.memory_space<vmem>>) attributes {dimension_semantics = [#tpu.dimension_semantics<arbitrary>], iteration_bounds = array<i64: 2>, scalar_prefetch = 0 : i64, scratch_operands = 3 : i64, tpu.core_type = #tpu.core_type<tc>, window_params = [{pipeline_mode = #tpu.pipeline_mode<synchronous>, transform_indices = @transform_0, window_bounds = array<i64: 8, 256>}, {transform_indices = @transform_1, window_bounds = array<i64: 256, 128>}, {transform_indices = @transform_2, window_bounds = array<i64: 1, 128>}, {transform_indices = @transform_3, window_bounds = array<i64: 128, 128>}, {pipeline_mode = #tpu.pipeline_mode<synchronous>, transform_indices = @transform_4, window_bounds = array<i64: 8, 128>}]} {
    %c0_i32 = arith.constant 0 : i32
    %0 = arith.cmpi eq, %arg0, %c0_i32 : i32
    %1 = arith.extui %0 : i1 to i32
    %c0_i32_0 = arith.constant 0 : i32
    %2 = arith.cmpi ne, %1, %c0_i32_0 : i32
    scf.if %2 {
      %cst_29 = arith.constant -1.000000e+30 : f32
      %54 = vector.broadcast %cst_29 : f32 to vector<8x1xf32>
      %c0_30 = arith.constant 0 : index
      %c0_31 = arith.constant 0 : index
      %55 = vector.load %arg6[%c0_30, %c0_31] : memref<8x1xf32, #tpu.memory_space<vmem>>, vector<8x1xf32>
      tpu.vector_store %arg6[%c0_30, %c0_31], %54 {strides = array<i32>} : memref<8x1xf32, #tpu.memory_space<vmem>>, vector<8x1xf32>,
      %cst_32 = arith.constant 0.000000e+00 : f32
      %56 = vector.broadcast %cst_32 : f32 to vector<8x1xf32>
      %c0_33 = arith.constant 0 : index
      %c0_34 = arith.constant 0 : index
      %57 = vector.load %arg7[%c0_33, %c0_34] : memref<8x1xf32, #tpu.memory_space<vmem>>, vector<8x1xf32>
      tpu.vector_store %arg7[%c0_33, %c0_34], %56 {strides = array<i32>} : memref<8x1xf32, #tpu.memory_space<vmem>>, vector<8x1xf32>,
      %cst_35 = arith.constant 0.000000e+00 : f32
      %58 = vector.broadcast %cst_35 : f32 to vector<8x128xf32>
      %c0_36 = arith.constant 0 : index
      %c0_37 = arith.constant 0 : index
      %59 = vector.load %arg8[%c0_36, %c0_37] : memref<8x128xf32, #tpu.memory_space<vmem>>, vector<8x128xf32>
      tpu.vector_store %arg8[%c0_36, %c0_37], %58 {strides = array<i32>} : memref<8x128xf32, #tpu.memory_space<vmem>>, vector<8x128xf32>,
    } else {
    }
    %c128_i32 = arith.constant 128 : i32
    %3 = arith.muli %arg0, %c128_i32 : i32
    %4 = tpu.assume_multiple %3, 128 : i32
    %c0 = arith.constant 0 : index
    %c0_1 = arith.constant 0 : index
    %5 = vector.load %arg2[%c0, %c0_1] : memref<256x128xbf16, #tpu.memory_space<vmem>>, vector<256x128xbf16>
    %6 = arith.extf %5 : vector<256x128xbf16> to vector<256x128xf32>
    %c0_2 = arith.constant 0 : index
    %c0_3 = arith.constant 0 : index
    %7 = vector.load %arg1[%c0_2, %c0_3] : memref<8x256xf32, #tpu.memory_space<vmem>>, vector<8x256xf32>
    %cst = arith.constant dense<0.000000e+00> : vector<8x128xf32>
    %8 = tpu.matmul %7, %6, %cst {dimension_numbers = #tpu.dot_dimension_numbers<[1], [0], [0], [1], [0, 0, 1, 1], [], []>} : vector<8x256xf32>, vector<256x128xf32>, vector<8x128xf32> -> vector<8x128xf32>
    %9 = vector.extract_strided_slice %8 {offsets = [0, 0], sizes = [1, 128], strides = [1, 1]} : vector<8x128xf32> to vector<1x128xf32>
    %c0_4 = arith.constant 0 : index
    %10 = arith.index_cast %4 : i32 to index
    %11 = vector.load %arg1[%c0_4, %10] : memref<8x256xf32, #tpu.memory_space<vmem>>, vector<8x128xf32>
    %12 = vector.extract_strided_slice %11 {offsets = [1, 0], sizes = [1, 128], strides = [1, 1]} : vector<8x128xf32> to vector<1x128xf32>
    %13 = arith.addf %9, %12 : vector<1x128xf32>
    %14 = tpu.iota {dimensions = array<i32: 0>} : vector<8x128xi32>
    %c0_5 = arith.constant 0 : index
    %c0_6 = arith.constant 0 : index
    %15 = vector.load %arg3[%c0_5, %c0_6] : memref<1x128xi32, #tpu.memory_space<vmem>>, vector<1x128xi32>
    %16 = vector.broadcast %15 : vector<1x128xi32> to vector<8x128xi32>
    %17 = arith.cmpi eq, %16, %14 : vector<8x128xi32>
    %18 = arith.extui %17 : vector<8x128xi1> to vector<8x128xi32>
    %19 = arith.sitofp %18 : vector<8x128xi32> to vector<8x128xf32>
    %cst_7 = arith.constant 0.000000e+00 : f32
    %20 = vector.broadcast %cst_7 : f32 to vector<8x128xf32>
    %21 = arith.cmpf ogt, %19, %20 : vector<8x128xf32>
    %cst_8 = arith.constant -1.000000e+30 : f32
    %22 = vector.shape_cast %13 : vector<1x128xf32> to vector<1x128xf32>
    %23 = vector.broadcast %22 : vector<1x128xf32> to vector<8x128xf32>
    %24 = vector.broadcast %cst_8 : f32 to vector<8x128xf32>
    %25 = arith.select %21, %23, %24 : vector<8x128xi1>, vector<8x128xf32>
    %cst_9 = arith.constant dense<0xFF800000> : vector<8xf32>
    %26 = vector.multi_reduction <maximumf>, %25, %cst_9 [1] : vector<8x128xf32> to vector<8xf32>
    %27 = vector.shape_cast %26 : vector<8xf32> to vector<8x1xf32>
    %c0_10 = arith.constant 0 : index
    %c0_11 = arith.constant 0 : index
    %28 = vector.load %arg6[%c0_10, %c0_11] : memref<8x1xf32, #tpu.memory_space<vmem>>, vector<8x1xf32>
    %29 = arith.maximumf %28, %27 : vector<8x1xf32>
    %c0_12 = arith.constant 0 : index
    %c0_13 = arith.constant 0 : index
    %30 = vector.load %arg6[%c0_12, %c0_13] : memref<8x1xf32, #tpu.memory_space<vmem>>, vector<8x1xf32>
    %31 = arith.subf %30, %29 : vector<8x1xf32>
    %32 = math.exp %31 : vector<8x1xf32>
    %33 = vector.broadcast %29 : vector<8x1xf32> to vector<8x128xf32>
    %34 = arith.subf %25, %33 : vector<8x128xf32>
    %35 = math.exp %34 : vector<8x128xf32>
    %36 = arith.mulf %19, %35 : vector<8x128xf32>
    %c0_14 = arith.constant 0 : index
    %c0_15 = arith.constant 0 : index
    %37 = vector.load %arg7[%c0_14, %c0_15] : memref<8x1xf32, #tpu.memory_space<vmem>>, vector<8x1xf32>
    %38 = arith.mulf %32, %37 : vector<8x1xf32>
    %cst_16 = arith.constant dense<0.000000e+00> : vector<8xf32>
    %39 = vector.multi_reduction <add>, %36, %cst_16 [1] : vector<8x128xf32> to vector<8xf32>
    %40 = vector.shape_cast %39 : vector<8xf32> to vector<8x1xf32>
    %41 = arith.addf %38, %40 : vector<8x1xf32>
    %c0_17 = arith.constant 0 : index
    %c0_18 = arith.constant 0 : index
    %42 = vector.load %arg7[%c0_17, %c0_18] : memref<8x1xf32, #tpu.memory_space<vmem>>, vector<8x1xf32>
    tpu.vector_store %arg7[%c0_17, %c0_18], %41 {strides = array<i32>} : memref<8x1xf32, #tpu.memory_space<vmem>>, vector<8x1xf32>,
    %c0_19 = arith.constant 0 : index
    %c0_20 = arith.constant 0 : index
    %43 = vector.load %arg8[%c0_19, %c0_20] : memref<8x128xf32, #tpu.memory_space<vmem>>, vector<8x128xf32>
    %44 = vector.broadcast %32 : vector<8x1xf32> to vector<8x128xf32>
    %45 = arith.mulf %44, %43 : vector<8x128xf32>
    %c0_21 = arith.constant 0 : index
    %c0_22 = arith.constant 0 : index
    %46 = vector.load %arg4[%c0_21, %c0_22] : memref<128x128xf32, #tpu.memory_space<vmem>>, vector<128x128xf32>
    %cst_23 = arith.constant dense<0.000000e+00> : vector<8x128xf32>
    %47 = tpu.matmul %36, %46, %cst_23 {dimension_numbers = #tpu.dot_dimension_numbers<[1], [0], [0], [1], [0, 0, 1, 1], [], []>} : vector<8x128xf32>, vector<128x128xf32>, vector<8x128xf32> -> vector<8x128xf32>
    %48 = arith.addf %45, %47 : vector<8x128xf32>
    %c0_24 = arith.constant 0 : index
    %c0_25 = arith.constant 0 : index
    %49 = vector.load %arg8[%c0_24, %c0_25] : memref<8x128xf32, #tpu.memory_space<vmem>>, vector<8x128xf32>
    tpu.vector_store %arg8[%c0_24, %c0_25], %48 {strides = array<i32>} : memref<8x128xf32, #tpu.memory_space<vmem>>, vector<8x128xf32>,
    %c0_26 = arith.constant 0 : index
    %c0_27 = arith.constant 0 : index
    %50 = vector.load %arg6[%c0_26, %c0_27] : memref<8x1xf32, #tpu.memory_space<vmem>>, vector<8x1xf32>
    tpu.vector_store %arg6[%c0_26, %c0_27], %29 {strides = array<i32>} : memref<8x1xf32, #tpu.memory_space<vmem>>, vector<8x1xf32>,
    %c1_i32 = arith.constant 1 : i32
    %51 = arith.cmpi eq, %arg0, %c1_i32 : i32
    %52 = arith.extui %51 : i1 to i32
    %c0_i32_28 = arith.constant 0 : i32
    %53 = arith.cmpi ne, %52, %c0_i32_28 : i32
    scf.if %53 {
      %c0_29 = arith.constant 0 : index
      %c0_30 = arith.constant 0 : index
      %54 = vector.load %arg7[%c0_29, %c0_30] : memref<8x1xf32, #tpu.memory_space<vmem>>, vector<8x1xf32>
      %cst_31 = arith.constant 0.000000e+00 : f32
      %55 = vector.broadcast %cst_31 : f32 to vector<8x1xf32>
      %56 = arith.cmpf ogt, %54, %55 : vector<8x1xf32>
      %cst_32 = arith.constant 1.000000e+00 : f32
      %57 = vector.broadcast %cst_32 : f32 to vector<8x1xf32>
      %58 = arith.select %56, %54, %57 : vector<8x1xi1>, vector<8x1xf32>
      %59 = tpu.reciprocal %58 {approx = true} : vector<8x1xf32> -> vector<8x1xf32>
      %60 = arith.mulf %58, %59 : vector<8x1xf32>
      %cst_33 = arith.constant 2.000000e+00 : f32
      %61 = vector.broadcast %cst_33 : f32 to vector<8x1xf32>
      %62 = arith.subf %61, %60 : vector<8x1xf32>
      %63 = arith.mulf %59, %62 : vector<8x1xf32>
      %cst_34 = arith.constant 0.000000e+00 : f32
      %64 = vector.broadcast %cst_34 : f32 to vector<8x1xf32>
      %65 = arith.cmpf ogt, %54, %64 : vector<8x1xf32>
      %cst_35 = arith.constant 0.000000e+00 : f32
      %66 = vector.broadcast %cst_35 : f32 to vector<8x1xf32>
      %67 = arith.select %65, %63, %66 : vector<8x1xi1>, vector<8x1xf32>
      %c0_36 = arith.constant 0 : index
      %c0_37 = arith.constant 0 : index
      %68 = vector.load %arg8[%c0_36, %c0_37] : memref<8x128xf32, #tpu.memory_space<vmem>>, vector<8x128xf32>
      %69 = vector.broadcast %67 : vector<8x1xf32> to vector<8x128xf32>
      %70 = arith.mulf %68, %69 : vector<8x128xf32>
      %c0_38 = arith.constant 0 : index
      %c0_39 = arith.constant 0 : index
      %71 = vector.load %arg5[%c0_38, %c0_39] : memref<8x128xf32, #tpu.memory_space<vmem>>, vector<8x128xf32>
      tpu.vector_store %arg5[%c0_38, %c0_39], %70 {strides = array<i32>} : memref<8x128xf32, #tpu.memory_space<vmem>>, vector<8x128xf32>,
    } else {
    }
    return
  }
  func.func @transform_0(%arg0: i32) -> (i32, i32) {
    %c0_i32 = arith.constant 0 : i32
    %c0_i32_0 = arith.constant 0 : i32
    %c0_i32_1 = arith.constant 0 : i32
    return %c0_i32, %c0_i32_0 : i32, i32
  }
  func.func @transform_1(%arg0: i32) -> (i32, i32) {
    %c0_i32 = arith.constant 0 : i32
    %c0_i32_0 = arith.constant 0 : i32
    return %c0_i32, %arg0 : i32, i32
  }
  func.func @transform_2(%arg0: i32) -> (i32, i32) {
    %c0_i32 = arith.constant 0 : i32
    %c0_i32_0 = arith.constant 0 : i32
    return %c0_i32, %arg0 : i32, i32
  }
  func.func @transform_3(%arg0: i32) -> (i32, i32) {
    %c0_i32 = arith.constant 0 : i32
    %c0_i32_0 = arith.constant 0 : i32
    return %arg0, %c0_i32 : i32, i32
  }
  func.func @transform_4(%arg0: i32) -> (i32, i32) {
    %c0_i32 = arith.constant 0 : i32
    %c0_i32_0 = arith.constant 0 : i32
    %c0_i32_1 = arith.constant 0 : i32
    return %c0_i32, %c0_i32_0 : i32, i32
  }
}

</mosaic_0001>

<llo_original>
// kernel: tpu_custom_call.1
$region0: #{tpu_custom_call.1}
  #allocation0 [shape = 'u32[]', space=smem, size = 0x4, offset = 0x4, fixed_abs, tag = 'smem constant byte address 0x4 - core index']
  #allocation1 [shape = 'u32[144,128]{1,0:T(1,128)}', space=vmem, size = 0x12000, scoped, tag = 'internal scratch']
  #allocation2 [shape = 'f32[8,1]{1,0:T(8,128)}', space=vmem, size = 0x1000, scoped, tag = 'scratch operand']
  #allocation3 [shape = 'f32[8,1]{1,0:T(8,128)}', space=vmem, size = 0x1000, scoped, tag = 'scratch operand']
  #allocation4 [shape = 'f32[8,128]{1,0:T(8,128)}', space=vmem, size = 0x1000, scoped, tag = 'scratch operand']
  %s0 = inlined_call_operand.hbm [shape: f32[8,256], index: 0, kind: input, shape index: {}]
  %s1 = inlined_call_operand.hbm [shape: bf16[256,256], index: 1, kind: input, shape index: {}]
  %s2 = inlined_call_operand.vmem [shape: s32[1,256], index: 2, kind: input, shape index: {}]
  %s3 = inlined_call_operand.hbm [shape: f32[256,128], index: 3, kind: input, shape index: {}]
  %s4 = inlined_call_operand.hbm [shape: f32[8,128], index: 4, kind: output, shape index: {}]
  %s5 = sld [smem:[#allocation0]]
  $region69: #{tpu_custom_call.1} parent=0
    _
  %s7 = ssub.s32 1, %s5
  %s8 = scalar_select 0, %s7, %s5
  $region1: #{tpu_custom_call.1} parent=0
    #allocation5 [shape = 'u8[8192]{0}', space=vmem, size = 0x2000, scoped, tag = 'input window, operand 0, single buffered']
    #allocation6 [shape = 's32[2]{0}', space=sflag, size = 0x8, scoped, tag = 'scoped memory for tpu_custom_call.1']
    #allocation7 [shape = 's32[2]{0}', space=sflag, size = 0x8, scoped, tag = 'scoped memory for tpu_custom_call.1']
    #allocation8 [shape = 'u8[131072]{0}', space=vmem, size = 0x20000, scoped, tag = 'input window, operand 1']
    #allocation9 [shape = 's32[2]{0}', space=sflag, size = 0x8, scoped, tag = 'scoped memory for tpu_custom_call.1']
    #allocation10 [shape = 'u8[131072]{0}', space=vmem, size = 0x20000, scoped, tag = 'input window, operand 3']
    #allocation11 [shape = 'u8[4096]{0}', space=vmem, size = 0x1000, scoped, tag = 'output window, operand 0, single buffered']
    %9 = vsyncpa [#allocation6], 0
    %10 = vsyncpa [#allocation9], 0
    %s11 = scalar_lea.sflag [#allocation9], 1
    %12 = vsyncpa %s11, 0
    %13 = vsyncpa [#allocation7], 0
    loop: start=0, step=1, limit=4
    $region2: #{tpu_custom_call.1} parent=1 // loop_pre_header
      _
    $region3: #{tpu_custom_call.1} parent=1 // loop_header
      %s15 = sphi 0, %s19
      %p16 = scmp.ge.s32.totalorder %s15, 4
      %s23 = sphi 0, %s23
      %s25 = sphi 0, %s23
      %s26 = sphi 0, %s25
      %s40 = sphi 0, %s26
      %s46 = sphi 0, %s48
      %s49 = sphi 0, %s46
      %s50 = sphi 0, %s49
      %s66 = sphi 0, %s50
      %s72 = sphi 0, %s74
      %s75 = sphi 0, %s72
      %s76 = sphi 0, %s75
      %s92 = sphi 0, %s76
      %s98 = sphi 0, %s100
      %s101 = sphi 0, %s98
      %s102 = sphi 0, %s101
      %s118 = sphi 0, %s102
      %s122 = sphi 0, %s122
      %s124 = sphi 0, %s122
      %s125 = sphi 0, %s124
      %s139 = sphi 0, %s125
    $region4: #{tpu_custom_call.1} parent=1 // loop_header_branch
      %18 = sbr.rel (%p16) target = $region8
    $region5: #{tpu_custom_call.1} parent=1 // loop_body
      %s20 = ssub.s32 %s15, 1
      %s21 = ssub.s32 %s15, 2
      %s22 = sadd.s32 %s15, 1
      %s24 = sadd.s32 %s23, 1
      %p27 = scmp.eq.s32.totalorder %s15, 1
      %p28 = scmp.ne.s32.totalorder %s23, %s25
      %p29 = scmp.eq.s32.totalorder %s15, 0
      %p30 = por %p28, %p29
      %p31 = scmp.ne.s32.totalorder %s23, %s25
      %p32 = scmp.eq.s32.totalorder %s20, 1
      %p33 = por %p31, %p32
      %p34 = scmp.ne.s32.totalorder %s25, %s26
      %p35 = scmp.eq.s32.totalorder %s20, 0
      %p36 = por %p34, %p35
      %p37 = scmp.ne.s32.totalorder %s25, %s26
      %p38 = scmp.eq.s32.totalorder %s21, 1
      %p39 = por %p37, %p38
      %p41 = scmp.ne.s32.totalorder %s26, %s40
      %p42 = scmp.eq.s32.totalorder %s21, 0
      %p43 = por %p41, %p42
      %s44 = ssub.s32 %s15, %s22
      %p45 = scmp.eq.s32.totalorder %s44, 0
      %s47 = sadd.s32 %s46, 1
      %s48 = scalar_select %p45, %s46, %s47
      %p51 = pneg %p45
      %p52 = scmp.eq.s32.totalorder %s15, 1
      %p53 = por %p51, %p52
      %p54 = scmp.ne.s32.totalorder %s46, %s49
      %p55 = scmp.eq.s32.totalorder %s15, 0
      %p56 = por %p54, %p55
      %p57 = scmp.ne.s32.totalorder %s46, %s49
      %p58 = scmp.eq.s32.totalorder %s20, 1
      %p59 = por %p57, %p58
      %p60 = scmp.ne.s32.totalorder %s49, %s50
      %p61 = scmp.eq.s32.totalorder %s20, 0
      %p62 = por %p60, %p61
      %p63 = scmp.ne.s32.totalorder %s49, %s50
      %p64 = scmp.eq.s32.totalorder %s21, 1
      %p65 = por %p63, %p64
      %p67 = scmp.ne.s32.totalorder %s50, %s66
      %p68 = scmp.eq.s32.totalorder %s21, 0
      %p69 = por %p67, %p68
      %s70 = ssub.s32 %s15, %s22
      %p71 = scmp.eq.s32.totalorder %s70, 0
      %s73 = sadd.s32 %s72, 1
      %s74 = scalar_select %p71, %s72, %s73
      %p77 = pneg %p71
      %p78 = scmp.eq.s32.totalorder %s15, 1
      %p79 = por %p77, %p78
      %p80 = scmp.ne.s32.totalorder %s72, %s75
      %p81 = scmp.eq.s32.totalorder %s15, 0
      %p82 = por %p80, %p81
      %p83 = scmp.ne.s32.totalorder %s72, %s75
      %p84 = scmp.eq.s32.totalorder %s20, 1
      %p85 = por %p83, %p84
      %p86 = scmp.ne.s32.totalorder %s75, %s76
      %p87 = scmp.eq.s32.totalorder %s20, 0
      %p88 = por %p86, %p87
      %p89 = scmp.ne.s32.totalorder %s75, %s76
      %p90 = scmp.eq.s32.totalorder %s21, 1
      %p91 = por %p89, %p90
      %p93 = scmp.ne.s32.totalorder %s76, %s92
      %p94 = scmp.eq.s32.totalorder %s21, 0
      %p95 = por %p93, %p94
      %s96 = ssub.s32 %s15, %s22
      %p97 = scmp.eq.s32.totalorder %s96, 0
      %s99 = sadd.s32 %s98, 1
      %s100 = scalar_select %p97, %s98, %s99
      %p103 = pneg %p97
      %p104 = scmp.eq.s32.totalorder %s15, 1
      %p105 = por %p103, %p104
      %p106 = scmp.ne.s32.totalorder %s98, %s101
      %p107 = scmp.eq.s32.totalorder %s15, 0
      %p108 = por %p106, %p107
      %p109 = scmp.ne.s32.totalorder %s98, %s101
      %p110 = scmp.eq.s32.totalorder %s20, 1
      %p111 = por %p109, %p110
      %p112 = scmp.ne.s32.totalorder %s101, %s102
      %p113 = scmp.eq.s32.totalorder %s20, 0
      %p114 = por %p112, %p113
      %p115 = scmp.ne.s32.totalorder %s101, %s102
      %p116 = scmp.eq.s32.totalorder %s21, 1
      %p117 = por %p115, %p116
      %p119 = scmp.ne.s32.totalorder %s102, %s118
      %p120 = scmp.eq.s32.totalorder %s21, 0
      %p121 = por %p119, %p120
      %s123 = sadd.s32 %s122, 1
      %p126 = scmp.eq.s32.totalorder %s15, 1
      %p127 = scmp.ne.s32.totalorder %s122, %s124
      %p128 = scmp.eq.s32.totalorder %s15, 0
      %p129 = por %p127, %p128
      %p130 = scmp.ne.s32.totalorder %s122, %s124
      %p131 = scmp.eq.s32.totalorder %s20, 1
      %p132 = por %p130, %p131
      %p133 = scmp.ne.s32.totalorder %s124, %s125
      %p134 = scmp.eq.s32.totalorder %s20, 0
      %p135 = por %p133, %p134
      %p136 = scmp.ne.s32.totalorder %s124, %s125
      %p137 = scmp.eq.s32.totalorder %s21, 1
      %p138 = por %p136, %p137
      %p140 = scmp.ne.s32.totalorder %s125, %s139
      %p141 = scmp.eq.s32.totalorder %s21, 0
      %p142 = por %p140, %p141
      %p143 = scmp.le.s32.totalorder 1, %s15
      %p144 = scmp.lt.s32.totalorder %s15, 3
      %p145 = pnand %p143, %p144
      %p146 = pneg %p145
      // Predicated region
      $region9: #{tpu_custom_call.1} parent=5 // pred_check
        _
      $region10: #{tpu_custom_call.1} parent=5 // pred_check_branch
        %148 = sbr.rel (%p145) target = $region12
      $region11: #{tpu_custom_call.1} parent=5 // pred_region
        %s149 = ssub.s32 %s15, 1
        // Predicated region
        $region13: #{tpu_custom_call.1} parent=11 // pred_check
          %p150 = pneg %p36
        $region14: #{tpu_custom_call.1} parent=11 // pred_check_branch
          %152 = sbr.rel (%p150) target = $region16
        $region15: #{tpu_custom_call.1} parent=11 // pred_region
          %s154 = ssub.s32 256, 256
          %155 = vsyncadd [#allocation6], %s154
          %s157 = sshll.u32 [#allocation5], 4
          %s158 = int_to_ptr.vmem [resolvable:$true] %s157
          %160 = dma.hbm_to_vmem [thread:$0]  %s0, 256, %s158, [#allocation6]
        $region16: #{tpu_custom_call.1} parent=11 // pred_fallthru
          _
      $region12: #{tpu_custom_call.1} parent=5 // pred_fallthru
        _
      %p161 = scmp.lt.s32.totalorder %s15, 2
      // Predicated region
      $region17: #{tpu_custom_call.1} parent=5 // pred_check
        %p162 = pneg %p161
      $region18: #{tpu_custom_call.1} parent=5 // pred_check_branch
        %164 = sbr.rel (%p162) target = $region20
      $region19: #{tpu_custom_call.1} parent=5 // pred_region
        // Predicated region
        $region21: #{tpu_custom_call.1} parent=19 // pred_check
          %p165 = pneg %p56
        $region22: #{tpu_custom_call.1} parent=19 // pred_check_branch
          %167 = sbr.rel (%p165) target = $region24
        $region23: #{tpu_custom_call.1} parent=19 // pred_region
          %s168 = sand.u32 %s15, 1
          %s169 = scalar_lea.sflag [#allocation9], %s168
          %s170 = sand.u32 %s46, 1
          %s171 = smul.addr %s170, 128
          %s172 = scalar_lea.vmem [#allocation8], %s171
          %s174 = ssub.s32 2048, 2048
          %175 = vsyncadd %s169, %s174
          %s176 = smul.addr %s15, 64
          %s177 = scalar_lea.hbm %s1, %s176
          %s178 = sshll.u32 %s172, 4
          %s179 = int_to_ptr.vmem [resolvable:$true] %s178
          %184 = dma.hbm_to_vmem [thread:$0]  %s177, 2048, %s179, %s169, 128, 64, 4
        $region24: #{tpu_custom_call.1} parent=19 // pred_fallthru
          _
        // Predicated region
        $region25: #{tpu_custom_call.1} parent=19 // pred_check
          %p185 = pneg %p82
        $region26: #{tpu_custom_call.1} parent=19 // pred_check_branch
          %187 = sbr.rel (%p185) target = $region28
        $region27: #{tpu_custom_call.1} parent=19 // pred_region
          %p188 = scmp.lt.s32.totalorder %s15, 1
          %s189 = scalar_select %p188, %s15, 1
          %s190 = scalar_lea.vmem %s2, %s189
        $region28: #{tpu_custom_call.1} parent=19 // pred_fallthru
          _
        // Predicated region
        $region29: #{tpu_custom_call.1} parent=19 // pred_check
          %p191 = pneg %p108
        $region30: #{tpu_custom_call.1} parent=19 // pred_check_branch
          %193 = sbr.rel (%p191) target = $region32
        $region31: #{tpu_custom_call.1} parent=19 // pred_region
          %s194 = sand.u32 %s15, 1
          %s195 = scalar_lea.sflag [#allocation9], %s194
          %s196 = sand.u32 %s98, 1
          %s197 = smul.addr %s196, 128
          %s198 = scalar_lea.vmem [#allocation10], %s197
          %s199 = smul.u32 16, %s15
          %s201 = ssub.s32 2048, 2048
          %202 = vsyncadd %s195, %s201
          %s203 = smul.addr %s199, 128
          %s204 = scalar_lea.hbm %s3, %s203
          %s205 = sshll.u32 %s198, 4
          %s206 = int_to_ptr.vmem [resolvable:$true] %s205
          %211 = dma.hbm_to_vmem [thread:$0]  %s204, 2048, %s206, %s195, 128, 128, 8
        $region32: #{tpu_custom_call.1} parent=19 // pred_fallthru
          _
      $region20: #{tpu_custom_call.1} parent=5 // pred_fallthru
        _
      %p212 = scmp.le.s32.totalorder 1, %s15
      %p213 = scmp.lt.s32.totalorder %s15, 3
      %p214 = pnand %p212, %p213
      %p215 = pneg %p214
      // Predicated region
      $region33: #{tpu_custom_call.1} parent=5 // pred_check
        _
      $region34: #{tpu_custom_call.1} parent=5 // pred_check_branch
        %217 = sbr.rel (%p214) target = $region36
      $region35: #{tpu_custom_call.1} parent=5 // pred_region
        %s218 = ssub.s32 %s15, 1
        // Predicated region
        $region37: #{tpu_custom_call.1} parent=35 // pred_check
          %p219 = pneg %p36
        $region38: #{tpu_custom_call.1} parent=35 // pred_check_branch
          %221 = sbr.rel (%p219) target = $region40
        $region39: #{tpu_custom_call.1} parent=35 // pred_region
          %222 = dma.done [#allocation6], 256
        $region40: #{tpu_custom_call.1} parent=35 // pred_fallthru
          _
        %s223 = sand.u32 %s20, 1
        %s224 = scalar_lea.sflag [#allocation9], %s223
        %s225 = sand.u32 %s49, 1
        %s226 = smul.addr %s225, 128
        %s227 = scalar_lea.vmem [#allocation8], %s226
        // Predicated region
        $region41: #{tpu_custom_call.1} parent=35 // pred_check
          %p228 = pneg %p62
        $region42: #{tpu_custom_call.1} parent=35 // pred_check_branch
          %230 = sbr.rel (%p228) target = $region44
        $region43: #{tpu_custom_call.1} parent=35 // pred_region
          %231 = dma.done %s224, 2048
        $region44: #{tpu_custom_call.1} parent=35 // pred_fallthru
          _
        %s232 = sand.u32 %s20, 1
        %s233 = scalar_lea.sflag [#allocation9], %s232
        %s234 = sand.u32 %s101, 1
        %s235 = smul.addr %s234, 128
        %s236 = scalar_lea.vmem [#allocation10], %s235
        // Predicated region
        $region45: #{tpu_custom_call.1} parent=35 // pred_check
          %p237 = pneg %p114
        $region46: #{tpu_custom_call.1} parent=35 // pred_check_branch
          %239 = sbr.rel (%p237) target = $region48
        $region47: #{tpu_custom_call.1} parent=35 // pred_region
          %240 = dma.done %s233, 2048
        $region48: #{tpu_custom_call.1} parent=35 // pred_fallthru
          _
        %p241 = pneg %p36
        %p242 = pneg %p33
        %s243 = sand.u32 %s20, 1
        %s244 = scalar_lea.sflag [#allocation9], %s243
        %s245 = sand.u32 %s49, 1
        %s246 = smul.addr %s245, 128
        %s247 = scalar_lea.vmem [#allocation8], %s246
        %p248 = pneg %p62
        %p249 = pneg %p59
        %p250 = scmp.lt.s32.totalorder %s20, 1
        %s251 = scalar_select %p250, %s20, 1
        %s252 = scalar_lea.vmem %s2, %s251
        %p253 = pneg %p88
        %p254 = pneg %p85
        %s255 = sand.u32 %s20, 1
        %s256 = scalar_lea.sflag [#allocation9], %s255
        %s257 = sand.u32 %s101, 1
        %s258 = smul.addr %s257, 128
        %s259 = scalar_lea.vmem [#allocation10], %s258
        %p260 = pneg %p114
        %p261 = pneg %p111
        %p262 = pneg %p135
        %p263 = pneg %p132
        %p264 = scmp.lt.s32.totalorder %s20, 1
        %s265 = scalar_select %p264, %s20, 1
        %s266 = scalar_lea.vmem %s2, %s265
        %s267 = smul.u32 16, %s20
        %p268 = scmp.eq.s32.totalorder %s20, 0
        // Predicated region
        $region49: #{tpu_custom_call.1} parent=35 // pred_check
          %p269 = pneg %p268
        $region50: #{tpu_custom_call.1} parent=35 // pred_check_branch
          %271 = sbr.rel (%p269) target = $region52
        $region51: #{tpu_custom_call.1} parent=35 // pred_region
          %vm272 = vcmask 7168
          %273 = vst.msk [vmem:[#allocation2] sm:$0xff] %vm272, -1e+30
          %274 = vst.msk [vmem:[#allocation3] sm:$0xff] %vm272, 0.0
          %275 = vst [vmem:[#allocation4] sm:$0xff] 0.0
        $region52: #{tpu_custom_call.1} parent=35 // pred_fallthru
          _
        %s276 = smul.u32 %s20, 128
        %v277 = vld [vmem:[%s227] sm:$0xf]
        %v278 = vld [vmem:[%s227 + $0x4] sm:$0xf]
        %v279 = vld [vmem:[%s227 + $0x8] sm:$0xf]
        %v280 = vld [vmem:[%s227 + $0xc] sm:$0xf]
        %v281 = vld [vmem:[%s227 + $0x10] sm:$0xf]
        %v282 = vld [vmem:[%s227 + $0x14] sm:$0xf]
        %v283 = vld [vmem:[%s227 + $0x18] sm:$0xf]
        %v284 = vld [vmem:[%s227 + $0x1c] sm:$0xf]
        %v285 = vld [vmem:[%s227 + $0x20] sm:$0xf]
        %v286 = vld [vmem:[%s227 + $0x24] sm:$0xf]
        %v287 = vld [vmem:[%s227 + $0x28] sm:$0xf]
        %v288 = vld [vmem:[%s227 + $0x2c] sm:$0xf]
        %v289 = vld [vmem:[%s227 + $0x30] sm:$0xf]
        %v290 = vld [vmem:[%s227 + $0x34] sm:$0xf]
        %v291 = vld [vmem:[%s227 + $0x38] sm:$0xf]
        %v292 = vld [vmem:[%s227 + $0x3c] sm:$0xf]
        %v293 = vld [vmem:[%s227 + $0x40] sm:$0xf]
        %v294 = vld [vmem:[%s227 + $0x44] sm:$0xf]
        %v295 = vld [vmem:[%s227 + $0x48] sm:$0xf]
        %v296 = vld [vmem:[%s227 + $0x4c] sm:$0xf]
        %v297 = vld [vmem:[%s227 + $0x50] sm:$0xf]
        %v298 = vld [vmem:[%s227 + $0x54] sm:$0xf]
        %v299 = vld [vmem:[%s227 + $0x58] sm:$0xf]
        %v300 = vld [vmem:[%s227 + $0x5c] sm:$0xf]
        %v301 = vld [vmem:[%s227 + $0x60] sm:$0xf]
        %v302 = vld [vmem:[%s227 + $0x64] sm:$0xf]
        %v303 = vld [vmem:[%s227 + $0x68] sm:$0xf]
        %v304 = vld [vmem:[%s227 + $0x6c] sm:$0xf]
        %v305 = vld [vmem:[%s227 + $0x70] sm:$0xf]
        %v306 = vld [vmem:[%s227 + $0x74] sm:$0xf]
        %v307 = vld [vmem:[%s227 + $0x78] sm:$0xf]
        %v308 = vld [vmem:[%s227 + $0x7c] sm:$0xf]
        %v309 = vunpack.c.l.bf16 %v277
        %v310 = vunpack.c.l.bf16 %v278
        %v311 = vunpack.c.l.bf16 %v279
        %v312 = vunpack.c.l.bf16 %v280
        %v313 = vunpack.c.l.bf16 %v281
        %v314 = vunpack.c.l.bf16 %v282
        %v315 = vunpack.c.l.bf16 %v283
        %v316 = vunpack.c.l.bf16 %v284
        %v317 = vunpack.c.l.bf16 %v285
        %v318 = vunpack.c.l.bf16 %v286
        %v319 = vunpack.c.l.bf16 %v287
        %v320 = vunpack.c.l.bf16 %v288
        %v321 = vunpack.c.l.bf16 %v289
        %v322 = vunpack.c.l.bf16 %v290
        %v323 = vunpack.c.l.bf16 %v291
        %v324 = vunpack.c.l.bf16 %v292
        %v325 = vunpack.c.l.bf16 %v293
        %v326 = vunpack.c.l.bf16 %v294
        %v327 = vunpack.c.l.bf16 %v295
        %v328 = vunpack.c.l.bf16 %v296
        %v329 = vunpack.c.l.bf16 %v297
        %v330 = vunpack.c.l.bf16 %v298
        %v331 = vunpack.c.l.bf16 %v299
        %v332 = vunpack.c.l.bf16 %v300
        %v333 = vunpack.c.l.bf16 %v301
        %v334 = vunpack.c.l.bf16 %v302
        %v335 = vunpack.c.l.bf16 %v303
        %v336 = vunpack.c.l.bf16 %v304
        %v337 = vunpack.c.l.bf16 %v305
        %v338 = vunpack.c.l.bf16 %v306
        %v339 = vunpack.c.l.bf16 %v307
        %v340 = vunpack.c.l.bf16 %v308
        %v341 = vld [vmem:[#allocation5] sm:$0xff]
        %v342 = vld [vmem:[#allocation5 + $0x8] sm:$0xff]
        %343 = vmatprep.subr.mxu0 0.0
        %344 = vmatpush1.msra.mxu0 %v324
        %345 = vmatprep.subr.mxu0 0.0
        %346 = vmatpush1.msra.mxu0 %v323
        %347 = vmatprep.subr.mxu0 0.0
        %348 = vmatpush1.msra.mxu0 %v322
        %349 = vmatprep.subr.mxu0 0.0
        %350 = vmatpush1.msra.mxu0 %v321
        %351 = vmatprep.subr.mxu0 0.0
        %352 = vmatpush1.msra.mxu0 %v320
        %353 = vmatprep.subr.mxu0 0.0
        %354 = vmatpush1.msra.mxu0 %v319
        %355 = vmatprep.subr.mxu0 0.0
        %356 = vmatpush1.msra.mxu0 %v318
        %357 = vmatprep.subr.mxu0 0.0
        %358 = vmatpush1.msra.mxu0 %v317
        %359 = vmatprep.subr.mxu0 0.0
        %360 = vmatpush1.msra.mxu0 %v316
        %361 = vmatprep.subr.mxu0 0.0
        %362 = vmatpush1.msra.mxu0 %v315
        %363 = vmatprep.subr.mxu0 0.0
        %364 = vmatpush1.msra.mxu0 %v314
        %365 = vmatprep.subr.mxu0 0.0
        %366 = vmatpush1.msra.mxu0 %v313
        %367 = vmatprep.subr.mxu0 0.0
        %368 = vmatpush1.msra.mxu0 %v312
        %369 = vmatprep.subr.mxu0 0.0
        %370 = vmatpush1.msra.mxu0 %v311
        %371 = vmatprep.subr.mxu0 0.0
        %372 = vmatpush1.msra.mxu0 %v310
        %373 = vmatprep.subr.mxu0 0.0
        %374 = vmatpush1.msra.mxu0 %v309
        %375 = vmatprep.subr.mxu0 0.0
        %376 = vmatpush2.msra.mxu0 %v340
        %377 = vmatprep.subr.mxu0 0.0
        %378 = vmatpush2.msra.mxu0 %v339
        %379 = vmatprep.subr.mxu0 0.0
        %380 = vmatpush2.msra.mxu0 %v338
        %381 = vmatprep.subr.mxu0 0.0
        %382 = vmatpush2.msra.mxu0 %v337
        %383 = vmatprep.subr.mxu0 0.0
        %384 = vmatpush2.msra.mxu0 %v336
        %385 = vmatprep.subr.mxu0 0.0
        %386 = vmatpush2.msra.mxu0 %v335
        %387 = vmatprep.subr.mxu0 0.0
        %388 = vmatpush2.msra.mxu0 %v334
        %389 = vmatprep.subr.mxu0 0.0
        %390 = vmatpush2.msra.mxu0 %v333
        %391 = vmatprep.subr.mxu0 0.0
        %392 = vmatpush2.msra.mxu0 %v332
        %393 = vmatprep.subr.mxu0 0.0
        %394 = vmatpush2.msra.mxu0 %v331
        %395 = vmatprep.subr.mxu0 0.0
        %396 = vmatpush2.msra.mxu0 %v330
        %397 = vmatprep.subr.mxu0 0.0
        %398 = vmatpush2.msra.mxu0 %v329
        %399 = vmatprep.subr.mxu0 0.0
        %400 = vmatpush2.msra.mxu0 %v328
        %401 = vmatprep.subr.mxu0 0.0
        %402 = vmatpush2.msra.mxu0 %v327
        %403 = vmatprep.subr.mxu0 0.0
        %404 = vmatpush2.msra.mxu0 %v326
        %405 = vmatprep.subr.mxu0 0.0
        %406 = vmatpush2.msra.mxu0 %v325
        %407 = vmatprep.mubr.f32.mxu0 %v342
        %408 = vmatmul.mubr.f32.gmra.mxu0 %v341
        %v409 = vpop.f32.mrf.mxu0
        %v410 = vadd.f32 0.0, %v409
        %v411 = vpop.f32.mrf.mxu0
        %412 = vdwg.mxu0
        %s413 = sshra.s32 %s276, 7
        %s414 = sand.u32 %s276, 127
        %s415 = smul.addr %s413, 8
        %s416 = scalar_lea.vmem [#allocation5], %s415
        %v417 = vld [vmem:[%s416] sm:$0xff]
        %v419 = vrot.slane %v417, 1
        %v421 = vadd.f32 %v410, %v419
        %v422 = vlaneseq
        %v423 = vshrl.u32 %v422, 7
        %v424 = vld [vmem:[%s266] sm:$0x1]
        %v425 = vlaneseq
        %v426 = vshrl.u32 %v425, 7
        %v427 = vsub.s32 0, %v426
        %v428 = vrot.slane %v424, %v427
        %vm429 = vcmp.eq.s32.totalorder %v428, %v423
        %v430 = vsel %vm429, 1, 0
        %v431 = vcvt.s32.f32 %v430
        %vm432 = vcmp.gt.f32.partialorder %v431, 0.0
        %v433 = vlaneseq
        %v434 = vshrl.u32 %v433, 7
        %v435 = vsub.s32 0, %v434
        %v436 = vrot.slane %v421, %v435
        %v437 = vsel %vm432, %v436, -1e+30
        %438 = vmax.xlane.f32.xlu0 %v437
        %v439 = vpop.xlane.xlu0 %438
        %v440 = vld [vmem:[#allocation2] sm:$0xff]
        %v441 = vmax.f32 %v440, %v439
        %v442 = vsub.f32 %v440, %v441
        %v443 = vmul.f32 %v442, 1.442695
        %v444 = vpow.pop %v443
        %446 = vset.pattern.permute.xlu0 0
        %447 = vperm.xlu0 %446, %v441
        %v448 = vpop.permute.xlu0 %447
        %v450 = vsub.f32 %v437, %v448
        %v451 = vmul.f32 %v450, 1.442695
        %v452 = vpow.pop %v451
        %v453 = vmul.f32 %v431, %v452
        %v454 = vld [vmem:[#allocation3] sm:$0xff]
        %v455 = vmul.f32 %v444, %v454
        %456 = vadd.xlane.f32.xlu0 %v453
        %v457 = vpop.xlane.xlu0 %456
        %v458 = vadd.f32 %v455, %v457
        %vm459 = vcmask 7168
        %460 = vst.msk [vmem:[#allocation3] sm:$0xff] %vm459, %v458
        %v461 = vld [vmem:[#allocation4] sm:$0xff]
        %463 = vset.pattern.permute.xlu0 0
        %464 = vperm.xlu0 %463, %v444
        %v465 = vpop.permute.xlu0 %464
        %v467 = vmul.f32 %v465, %v461
        %v468 = vld [vmem:[%s236] sm:$0xff]
        %v469 = vld [vmem:[%s236 + $0x8] sm:$0xff]
        %v470 = vld [vmem:[%s236 + $0x10] sm:$0xff]
        %v471 = vld [vmem:[%s236 + $0x18] sm:$0xff]
        %v472 = vld [vmem:[%s236 + $0x20] sm:$0xff]
        %v473 = vld [vmem:[%s236 + $0x28] sm:$0xff]
        %v474 = vld [vmem:[%s236 + $0x30] sm:$0xff]
        %v475 = vld [vmem:[%s236 + $0x38] sm:$0xff]
        %v476 = vld [vmem:[%s236 + $0x40] sm:$0xff]
        %v477 = vld [vmem:[%s236 + $0x48] sm:$0xff]
        %v478 = vld [vmem:[%s236 + $0x50] sm:$0xff]
        %v479 = vld [vmem:[%s236 + $0x58] sm:$0xff]
        %v480 = vld [vmem:[%s236 + $0x60] sm:$0xff]
        %v481 = vld [vmem:[%s236 + $0x68] sm:$0xff]
        %v482 = vld [vmem:[%s236 + $0x70] sm:$0xff]
        %v483 = vld [vmem:[%s236 + $0x78] sm:$0xff]
        %484 = vmatprep.subr.mxu0 0.0
        %485 = vmatpush1.msra.mxu0 %v483
        %486 = vmatprep.subr.mxu0 0.0
        %487 = vmatpush1.msra.mxu0 %v482
        %488 = vmatprep.subr.mxu0 0.0
        %489 = vmatpush1.msra.mxu0 %v481
        %490 = vmatprep.subr.mxu0 0.0
        %491 = vmatpush1.msra.mxu0 %v480
        %492 = vmatprep.subr.mxu0 0.0
        %493 = vmatpush1.msra.mxu0 %v479
        %494 = vmatprep.subr.mxu0 0.0
        %495 = vmatpush1.msra.mxu0 %v478
        %496 = vmatprep.subr.mxu0 0.0
        %497 = vmatpush1.msra.mxu0 %v477
        %498 = vmatprep.subr.mxu0 0.0
        %499 = vmatpush1.msra.mxu0 %v476
        %500 = vmatprep.subr.mxu0 0.0
        %501 = vmatpush1.msra.mxu0 %v475
        %502 = vmatprep.subr.mxu0 0.0
        %503 = vmatpush1.msra.mxu0 %v474
        %504 = vmatprep.subr.mxu0 0.0
        %505 = vmatpush1.msra.mxu0 %v473
        %506 = vmatprep.subr.mxu0 0.0
        %507 = vmatpush1.msra.mxu0 %v472
        %508 = vmatprep.subr.mxu0 0.0
        %509 = vmatpush1.msra.mxu0 %v471
        %510 = vmatprep.subr.mxu0 0.0
        %511 = vmatpush1.msra.mxu0 %v470
        %512 = vmatprep.subr.mxu0 0.0
        %513 = vmatpush1.msra.mxu0 %v469
        %514 = vmatprep.subr.mxu0 0.0
        %515 = vmatpush1.msra.mxu0 %v468
        %516 = vmatprep.subr.mxu0 0.0
        %517 = vmatpush2.msra.mxu0 0.0
        %518 = vmatprep.subr.mxu0 0.0
        %519 = vmatpush2.msra.mxu0 0.0
        %520 = vmatprep.subr.mxu0 0.0
        %521 = vmatpush2.msra.mxu0 0.0
        %522 = vmatprep.subr.mxu0 0.0
        %523 = vmatpush2.msra.mxu0 0.0
        %524 = vmatprep.subr.mxu0 0.0
        %525 = vmatpush2.msra.mxu0 0.0
        %526 = vmatprep.subr.mxu0 0.0
        %527 = vmatpush2.msra.mxu0 0.0
        %528 = vmatprep.subr.mxu0 0.0
        %529 = vmatpush2.msra.mxu0 0.0
        %530 = vmatprep.subr.mxu0 0.0
        %531 = vmatpush2.msra.mxu0 0.0
        %532 = vmatprep.subr.mxu0 0.0
        %533 = vmatpush2.msra.mxu0 0.0
        %534 = vmatprep.subr.mxu0 0.0
        %535 = vmatpush2.msra.mxu0 0.0
        %536 = vmatprep.subr.mxu0 0.0
        %537 = vmatpush2.msra.mxu0 0.0
        %538 = vmatprep.subr.mxu0 0.0
        %539 = vmatpush2.msra.mxu0 0.0
        %540 = vmatprep.subr.mxu0 0.0
        %541 = vmatpush2.msra.mxu0 0.0
        %542 = vmatprep.subr.mxu0 0.0
        %543 = vmatpush2.msra.mxu0 0.0
        %544 = vmatprep.subr.mxu0 0.0
        %545 = vmatpush2.msra.mxu0 0.0
        %546 = vmatprep.subr.mxu0 0.0
        %547 = vmatpush2.msra.mxu0 0.0
        %548 = vmatprep.mubr.f32.mxu0 0.0
        %549 = vmatmul.mubr.f32.gmra.mxu0 %v453
        %v550 = vpop.f32.mrf.mxu0
        %v551 = vadd.f32 0.0, %v550
        %v552 = vpop.f32.mrf.mxu0
        %553 = vdwg.mxu0
        %v554 = vadd.f32 %v467, %v551
        %555 = vst [vmem:[#allocation4] sm:$0xff] %v554
        %556 = vst.msk [vmem:[#allocation2] sm:$0xff] %vm459, %v441
        %p557 = scmp.eq.s32.totalorder %s20, 1
        // Predicated region
        $region53: #{tpu_custom_call.1} parent=35 // pred_check
          %p558 = pneg %p557
        $region54: #{tpu_custom_call.1} parent=35 // pred_check_branch
          %560 = sbr.rel (%p558) target = $region56
        $region55: #{tpu_custom_call.1} parent=35 // pred_region
          %v561 = vld [vmem:[#allocation3] sm:$0xff]
          %vm562 = vcmp.gt.f32.partialorder %v561, 0.0
          %v563 = vsel %vm562, %v561, 1.0
          %v564 = vrcp.pop %v563
          %v565 = vmul.f32 %v563, %v564
          %v566 = vsub.f32 2.0, %v565
          %v567 = vmul.f32 %v564, %v566
          %v568 = vsel %vm562, %v567, 0.0
          %v569 = vld [vmem:[#allocation4] sm:$0xff]
          %571 = vset.pattern.permute.xlu0 0
          %572 = vperm.xlu0 %571, %v568
          %v573 = vpop.permute.xlu0 %572
          %v575 = vmul.f32 %v569, %v573
          %576 = vst [vmem:[#allocation11] sm:$0xff] %v575
        $region56: #{tpu_custom_call.1} parent=35 // pred_fallthru
          _
        // Predicated region
        $region57: #{tpu_custom_call.1} parent=35 // pred_check
          %p577 = pneg %p132
        $region58: #{tpu_custom_call.1} parent=35 // pred_check_branch
          %579 = sbr.rel (%p577) target = $region60
        $region59: #{tpu_custom_call.1} parent=35 // pred_region
          %s581 = ssub.s32 128, 128
          %582 = vsyncadd [#allocation7], %s581
          %s584 = sshll.u32 [#allocation11], 4
          %s585 = int_to_ptr.vmem [resolvable:$true] %s584
          %587 = dma.vmem_to_hbm [thread:$0]  %s585, 128, %s4, [#allocation7]
        $region60: #{tpu_custom_call.1} parent=35 // pred_fallthru
          _
        // Predicated region
        $region61: #{tpu_custom_call.1} parent=35 // pred_check
          %p588 = pneg %p132
        $region62: #{tpu_custom_call.1} parent=35 // pred_check_branch
          %590 = sbr.rel (%p588) target = $region64
        $region63: #{tpu_custom_call.1} parent=35 // pred_region
          %591 = dma.done [#allocation7], 128
        $region64: #{tpu_custom_call.1} parent=35 // pred_fallthru
          _
      $region36: #{tpu_custom_call.1} parent=5 // pred_fallthru
        _
      %p592 = scmp.le.s32.totalorder 2, %s15
      // Predicated region
      $region65: #{tpu_custom_call.1} parent=5 // pred_check
        %p593 = pneg %p592
      $region66: #{tpu_custom_call.1} parent=5 // pred_check_branch
        %595 = sbr.rel (%p593) target = $region68
      $region67: #{tpu_custom_call.1} parent=5 // pred_region
        %s596 = ssub.s32 %s15, 2
      $region68: #{tpu_custom_call.1} parent=5 // pred_fallthru
        _
    $region6: #{tpu_custom_call.1} parent=1 // loop_footer
      %s19 = sadd.s32 1, %s15
    $region7: #{tpu_custom_call.1} parent=1 // loop_footer_branch
      %14 = sbr.rel target = $region3
    $region8: #{tpu_custom_call.1} parent=1 // loop_exit
      _
    %597 = vsyncpa [#allocation6], 1
    %s598 = scalar_lea.sflag [#allocation6], 1
    %599 = vsyncpa %s598, 1
    %600 = vsyncpa [#allocation9], 1
    %s601 = scalar_lea.sflag [#allocation9], 1
    %602 = vsyncpa %s601, 1
    %603 = vsyncpa [#allocation7], 1
    %s604 = scalar_lea.sflag [#allocation7], 1
    %605 = vsyncpa %s604, 1

</llo_original>
